<compile_context>
chip_gen: v7x
topology: tpu7x:2x2x1
jax: 0.10.0
libtpu: 0.0.40
codegen_flags: <defaults>
</compile_context>

<pallas_src>
import functools

import jax
import jax.numpy as jnp
from jax.experimental import pallas as pl
from jax.experimental.pallas import tpu as pltpu


# --------------------------------------------------------------------------
# Kernel
# --------------------------------------------------------------------------
def _mlp_gaussian_kernel(n_hidden, matmul_dtype, x_ref, *refs):
    # refs layout (after x_ref):
    #   wb_ref * n_hidden   each [fan_in+1, fan_out_padded]  ([W ; b] stacked)
    #   head_wb_ref         [d_hidden_padded+1, out_pad]     ([W_mu|W_sg|0 ; b_mu|b_sg|0])
    #   mask_ref            [1, out_pad] int32, 1 on sigma columns
    #   out_ref             [batch_tile, out_pad]            ([mu | sigma | pad])
    hidden_wb_refs = refs[:n_hidden]
    head_wb_ref = refs[n_hidden]
    mask_ref = refs[n_hidden + 1]
    out_ref = refs[n_hidden + 2]

    def _linear(h, wb_ref):
        fan_in = wb_ref.shape[0] - 1
        w = wb_ref[0:fan_in, :]                                 # stored dtype (f32 or bf16)
        b = wb_ref[fan_in:fan_in + 1, :].astype(jnp.float32)
        lhs = h if matmul_dtype is None else h.astype(matmul_dtype)
        return jnp.dot(lhs, w, preferred_element_type=jnp.float32) + b

    h = x_ref[...].astype(jnp.float32)
    for li in range(n_hidden):
        h = jax.nn.sigmoid(_linear(h, hidden_wb_refs[li]))

    # Fused heads: one MXU pass, one lane-dense (multiple-of-128) store.
    z = _linear(h, head_wb_ref)                                 # [bt, out_pad]
    is_sigma = mask_ref[...] != 0                               # [1, out_pad] -> broadcasts
    # exp() rides the otherwise-idle EUP slot; feed it 0 on non-sigma lanes so
    # large mu pre-activations can't produce inf in discarded lanes.
    z_sig = jnp.where(is_sigma, z, 0.0)
    out_ref[...] = jnp.where(is_sigma, jnp.exp(z_sig), z).astype(out_ref.dtype)


# --------------------------------------------------------------------------
# One-time parameter prepack (do this at init time, NOT per forward call)
# --------------------------------------------------------------------------
def _round_up(n, m):
    return ((n + m - 1) // m) * m


def prepack_params(params, d_in, *, lane_pad=128, matmul_dtype=None):
    """Pack [W;b] per layer, fuse + pad mu/sigma heads, build the sigma mask.

    params = {'hidden': [(W, b), ...], 'mu': (W, b), 'sigma': (W, b)}
    Weights W are [fan_in, fan_out]; biases b are [1, fan_out].
    """
    hidden = params["hidden"]
    w_mu, b_mu = params["mu"]
    w_sg, b_sg = params["sigma"]
    d_out = w_mu.shape[1]

    packed = []
    in_width = d_in                              # current (possibly padded) feature width
    for (w, b) in hidden:
        fan_in, fan_out = w.shape
        fan_out_p = _round_up(fan_out, lane_pad)
        w_p = jnp.zeros((in_width, fan_out_p), jnp.float32)
        w_p = w_p.at[:fan_in, :fan_out].set(w.astype(jnp.float32))
        b_p = jnp.zeros((1, fan_out_p), jnp.float32)
        b_p = b_p.at[:, :fan_out].set(b.reshape(1, -1).astype(jnp.float32))
        packed.append(jnp.concatenate([w_p, b_p], axis=0))      # [in_width+1, fan_out_p]
        in_width = fan_out_p

    # Fused, lane-padded head: [mu | sigma | zeros] -> out_pad multiple of 128.
    two_d_out = 2 * d_out
    out_pad = _round_up(two_d_out, lane_pad)
    dh = w_mu.shape[0]
    w_head = jnp.zeros((in_width, out_pad), jnp.float32)
    w_head = w_head.at[:dh, :d_out].set(w_mu.astype(jnp.float32))
    w_head = w_head.at[:dh, d_out:two_d_out].set(w_sg.astype(jnp.float32))
    b_head = jnp.zeros((1, out_pad), jnp.float32)
    b_head = b_head.at[:, :d_out].set(b_mu.reshape(1, -1).astype(jnp.float32))
    b_head = b_head.at[:, d_out:two_d_out].set(b_sg.reshape(1, -1).astype(jnp.float32))
    packed.append(jnp.concatenate([w_head, b_head], axis=0))    # [in_width+1, out_pad]

    if matmul_dtype is not None:
        # Store weights in the matmul dtype once; kernel only casts the lhs.
        packed = [p.astype(matmul_dtype) for p in packed]

    col = jnp.arange(out_pad)
    sigma_mask = ((col >= d_out) & (col < two_d_out)).astype(jnp.int32).reshape(1, out_pad)

    return {
        "packed": packed,
        "sigma_mask": sigma_mask,
        "d_in": d_in,
        "d_out": d_out,
        "out_pad": out_pad,
        "n_hidden": len(hidden),
        "matmul_dtype": matmul_dtype,
    }


# --------------------------------------------------------------------------
# Tile / VMEM sizing
# --------------------------------------------------------------------------
def _choose_batch_tile(B):
    if B % 8 != 0:
        return B                                  # single full-dim block
    cap = min(B, 1024)                            # amortize ~0.35us/step, bound VMEM
    if B >= 16:
        # Keep at least 2 grid steps so "parallel" can feed both v7x TensorCores.
        cap = min(cap, max(8, (B // 2 // 8) * 8))
    t = cap - (cap % 8)
    while t >= 8:
        if B % t == 0:
            return t
        t -= 8
    return B


def _vmem_limit_bytes(prepacked, batch_tile, x_dtype):
    w_bytes = sum(int(p.size) * p.dtype.itemsize for p in prepacked["packed"])
    w_bytes += int(prepacked["sigma_mask"].size) * 4
    itemsize = jnp.dtype(x_dtype).itemsize
    x_tile = batch_tile * prepacked["d_in"] * itemsize
    out_tile = batch_tile * prepacked["out_pad"] * itemsize
    need = w_bytes + 2 * (x_tile + out_tile)      # double-buffered streamed tiles
    need = int(need * 1.5) + (4 << 20)            # headroom for compiler scratch
    try:
        cap = int(pltpu.get_tpu_info().vmem_capacity_bytes * 3 // 4)
    except Exception:
        cap = 48 << 20                            # v7x-safe fallback (64 MiB/TC)
    if w_bytes > cap:
        # TODO(synk): tile the feature dim with a second grid axis instead of
        # whole-weight VMEM residency when weights exceed the VMEM budget.
        raise ValueError(
            f"Packed weights ({w_bytes} B) exceed the VMEM budget ({cap} B).")
    return max(32 << 20, min(need, cap))


# --------------------------------------------------------------------------
# Forward wrapper
# --------------------------------------------------------------------------
def network_gaussian_forward(x, prepacked, *, batch_tile=None):
    """Fused forward. Returns (mu, sigma) with sigma = exp(linear_sigma(h))."""
    B, d_in = x.shape
    assert d_in == prepacked["d_in"]
    d_out = prepacked["d_out"]
    out_pad = prepacked["out_pad"]
    n_hidden = prepacked["n_hidden"]
    packed = prepacked["packed"]
    sigma_mask = prepacked["sigma_mask"]

    if batch_tile is None:
        batch_tile = _choose_batch_tile(B)
    assert B % batch_tile == 0
    assert batch_tile == B or batch_tile % 8 == 0
    grid = (B // batch_tile,)

    # Whole weight arrays + mask resident in VMEM once (no per-step DMA).
    resident_spec = pl.BlockSpec(memory_space=pltpu.MemorySpace.VMEM)

    in_specs = [pl.BlockSpec((batch_tile, d_in), lambda i: (i, 0))]
    in_specs += [resident_spec] * (len(packed) + 1)            # weights + sigma_mask

    out_shape = jax.ShapeDtypeStruct((B, out_pad), x.dtype)
    out_specs = pl.BlockSpec((batch_tile, out_pad), lambda i: (i, 0))

    kernel = functools.partial(
        _mlp_gaussian_kernel, n_hidden, prepacked["matmul_dtype"])

    fused = pl.pallas_call(
        kernel,
        out_shape=out_shape,
        grid_spec=pltpu.PrefetchScalarGridSpec(
            num_scalar_prefetch=0,
            grid=grid,
            in_specs=in_specs,
            out_specs=out_specs,
        ),
        compiler_params=pltpu.CompilerParams(
            dimension_semantics=("parallel",),
            vmem_limit_bytes=_vmem_limit_bytes(prepacked, batch_tile, x.dtype),
        ),
    )(x, *packed, sigma_mask)

    # Cheap wrapper-side slice of the lane-dense output slab.
    return fused[:, :d_out], fused[:, d_out:2 * d_out]


# --------------------------------------------------------------------------
# Reference / init / test
# --------------------------------------------------------------------------
def init_params(key, sizes, dtype=jnp.float32):
    """Deterministic init mimicking nn.Linear's U(-1/sqrt(fan_in), 1/sqrt(fan_in))."""
    params = {"hidden": []}
    keys = jax.random.split(key, 2 * (len(sizes) - 1))
    k_idx = 0

    def _linear(kw, kb, fan_in, fan_out):
        bound = 1.0 / jnp.sqrt(jnp.array(fan_in, dtype=jnp.float32))
        w = jax.random.uniform(kw, (fan_in, fan_out), dtype, -bound, bound)
        b = jax.random.uniform(kb, (1, fan_out), dtype, -bound, bound)
        return w, b

    for inp_size, out_size in zip(sizes[:-2], sizes[1:-1]):
        w, b = _linear(keys[k_idx], keys[k_idx + 1], inp_size, out_size)
        k_idx += 2
        params["hidden"].append((w, b))

    params["mu"] = _linear(keys[k_idx], keys[k_idx + 1], sizes[-2], sizes[-1])
    k_idx += 2
    params["sigma"] = _linear(keys[k_idx], keys[k_idx + 1], sizes[-2], sizes[-1])
    return params


def reference_forward(x, params):
    h = x.astype(jnp.float32)
    for (w, b) in params["hidden"]:
        h = jax.nn.sigmoid(h @ w + b)
    w_mu, b_mu = params["mu"]
    w_sg, b_sg = params["sigma"]
    return (h @ w_mu + b_mu), jnp.exp(h @ w_sg + b_sg)


if __name__ == "__main__":
    # sizes = [input, hidden..., output]  -> two hidden sigmoid layers here.
    sizes = [32, 64, 64, 16]
    batch = 8

    key = jax.random.PRNGKey(0)
    k_params, k_x = jax.random.split(key)
    params = init_params(k_params, sizes)
    x = jax.random.normal(k_x, (batch, sizes[0]), jnp.float32)

    # One-time prepack (would live at model-init time in a real training loop).
    prepacked = prepack_params(params, d_in=sizes[0], matmul_dtype=None)

    mu, sigma = network_gaussian_forward(x, prepacked)
    mu, sigma = jax.block_until_ready((mu, sigma))

    mu_ref, sigma_ref = reference_forward(x, params)
    assert jnp.allclose(mu, mu_ref, atol=1e-5, rtol=1e-5)
    assert jnp.allclose(sigma, sigma_ref, atol=1e-5, rtol=1e-5)

    print("KERNEL_OK")
</pallas_src>

<mosaic_0001>
module attributes {stable_mosaic.version = 11 : i64} {
  func.func @_mlp_gaussian_kernel(%arg0: i32, %arg1: memref<8x32xf32, #tpu.memory_space<vmem>>, %arg2: memref<33x128xf32, #tpu.memory_space<vmem>>, %arg3: memref<129x128xf32, #tpu.memory_space<vmem>>, %arg4: memref<129x128xf32, #tpu.memory_space<vmem>>, %arg5: memref<1x128xi32, #tpu.memory_space<vmem>>, %arg6: memref<8x128xf32, #tpu.memory_space<vmem>>) attributes {dimension_semantics = [#tpu.dimension_semantics<parallel>], iteration_bounds = array<i64: 1>, scalar_prefetch = 0 : i64, scratch_operands = 0 : i64, tpu.core_type = #tpu.core_type<tc>, window_params = [{transform_indices = @transform_0, window_bounds = array<i64: 8, 32>}, {pipeline_mode = #tpu.pipeline_mode<synchronous>, transform_indices = @transform_1, window_bounds = array<i64: 33, 128>}, {pipeline_mode = #tpu.pipeline_mode<synchronous>, transform_indices = @transform_2, window_bounds = array<i64: 129, 128>}, {pipeline_mode = #tpu.pipeline_mode<synchronous>, transform_indices = @transform_3, window_bounds = array<i64: 129, 128>}, {pipeline_mode = #tpu.pipeline_mode<synchronous>, transform_indices = @transform_4, window_bounds = array<i64: 1, 128>}, {transform_indices = @transform_5, window_bounds = array<i64: 8, 128>}]} {
    %c0 = arith.constant 0 : index
    %c0_0 = arith.constant 0 : index
    %0 = vector.load %arg1[%c0, %c0_0] : memref<8x32xf32, #tpu.memory_space<vmem>>, vector<8x32xf32>
    %c0_1 = arith.constant 0 : index
    %c0_2 = arith.constant 0 : index
    %1 = vector.load %arg2[%c0_1, %c0_2] : memref<33x128xf32, #tpu.memory_space<vmem>>, vector<32x128xf32>
    %c32 = arith.constant 32 : index
    %c0_3 = arith.constant 0 : index
    %2 = vector.load %arg2[%c32, %c0_3] : memref<33x128xf32, #tpu.memory_space<vmem>>, vector<1x128xf32>
    %cst = arith.constant dense<0.000000e+00> : vector<8x128xf32>
    %3 = tpu.matmul %0, %1, %cst {dimension_numbers = #tpu.dot_dimension_numbers<[1], [0], [0], [1], [0, 0, 1, 1], [], []>} : vector<8x32xf32>, vector<32x128xf32>, vector<8x128xf32> -> vector<8x128xf32>
    %4 = vector.broadcast %2 : vector<1x128xf32> to vector<8x128xf32>
    %5 = arith.addf %3, %4 : vector<8x128xf32>
    %6 = arith.negf %5 : vector<8x128xf32>
    %7 = math.exp %6 : vector<8x128xf32>
    %cst_4 = arith.constant 1.000000e+00 : f32
    %8 = vector.broadcast %cst_4 : f32 to vector<8x128xf32>
    %9 = arith.addf %8, %7 : vector<8x128xf32>
    %10 = arith.divf %8, %9 : vector<8x128xf32>
    %c0_5 = arith.constant 0 : index
    %c0_6 = arith.constant 0 : index
    %11 = vector.load %arg3[%c0_5, %c0_6] : memref<129x128xf32, #tpu.memory_space<vmem>>, vector<128x128xf32>
    %c128 = arith.constant 128 : index
    %c0_7 = arith.constant 0 : index
    %12 = vector.load %arg3[%c128, %c0_7] : memref<129x128xf32, #tpu.memory_space<vmem>>, vector<1x128xf32>
    %cst_8 = arith.constant dense<0.000000e+00> : vector<8x128xf32>
    %13 = tpu.matmul %10, %11, %cst_8 {dimension_numbers = #tpu.dot_dimension_numbers<[1], [0], [0], [1], [0, 0, 1, 1], [], []>} : vector<8x128xf32>, vector<128x128xf32>, vector<8x128xf32> -> vector<8x128xf32>
    %14 = vector.broadcast %12 : vector<1x128xf32> to vector<8x128xf32>
    %15 = arith.addf %13, %14 : vector<8x128xf32>
    %16 = arith.negf %15 : vector<8x128xf32>
    %17 = math.exp %16 : vector<8x128xf32>
    %cst_9 = arith.constant 1.000000e+00 : f32
    %18 = vector.broadcast %cst_9 : f32 to vector<8x128xf32>
    %19 = arith.addf %18, %17 : vector<8x128xf32>
    %20 = arith.divf %18, %19 : vector<8x128xf32>
    %c0_10 = arith.constant 0 : index
    %c0_11 = arith.constant 0 : index
    %21 = vector.load %arg4[%c0_10, %c0_11] : memref<129x128xf32, #tpu.memory_space<vmem>>, vector<128x128xf32>
    %c128_12 = arith.constant 128 : index
    %c0_13 = arith.constant 0 : index
    %22 = vector.load %arg4[%c128_12, %c0_13] : memref<129x128xf32, #tpu.memory_space<vmem>>, vector<1x128xf32>
    %cst_14 = arith.constant dense<0.000000e+00> : vector<8x128xf32>
    %23 = tpu.matmul %20, %21, %cst_14 {dimension_numbers = #tpu.dot_dimension_numbers<[1], [0], [0], [1], [0, 0, 1, 1], [], []>} : vector<8x128xf32>, vector<128x128xf32>, vector<8x128xf32> -> vector<8x128xf32>
    %24 = vector.broadcast %22 : vector<1x128xf32> to vector<8x128xf32>
    %25 = arith.addf %23, %24 : vector<8x128xf32>
    %c0_15 = arith.constant 0 : index
    %c0_16 = arith.constant 0 : index
    %26 = vector.load %arg5[%c0_15, %c0_16] : memref<1x128xi32, #tpu.memory_space<vmem>>, vector<1x128xi32>
    %c0_i32 = arith.constant 0 : i32
    %27 = vector.broadcast %c0_i32 : i32 to vector<1x128xi32>
    %28 = arith.cmpi ne, %26, %27 : vector<1x128xi32>
    %cst_17 = arith.constant 0.000000e+00 : f32
    %29 = vector.shape_cast %28 : vector<1x128xi1> to vector<1x128xi1>
    %30 = vector.broadcast %29 : vector<1x128xi1> to vector<8x128xi1>
    %31 = vector.broadcast %cst_17 : f32 to vector<8x128xf32>
    %32 = arith.select %30, %25, %31 : vector<8x128xi1>, vector<8x128xf32>
    %33 = math.exp %32 : vector<8x128xf32>
    %34 = vector.shape_cast %28 : vector<1x128xi1> to vector<1x128xi1>
    %35 = vector.broadcast %34 : vector<1x128xi1> to vector<8x128xi1>
    %36 = arith.select %35, %33, %25 : vector<8x128xi1>, vector<8x128xf32>
    %c0_18 = arith.constant 0 : index
    %c0_19 = arith.constant 0 : index
    %37 = vector.load %arg6[%c0_18, %c0_19] : memref<8x128xf32, #tpu.memory_space<vmem>>, vector<8x128xf32>
    tpu.vector_store %arg6[%c0_18, %c0_19], %36 {strides = array<i32>} : memref<8x128xf32, #tpu.memory_space<vmem>>, vector<8x128xf32>,
    return
  }
  func.func @transform_0(%arg0: i32) -> (i32, i32) {
    %c0_i32 = arith.constant 0 : i32
    %c0_i32_0 = arith.constant 0 : i32
    return %arg0, %c0_i32 : i32, i32
  }
  func.func @transform_1(%arg0: i32) -> (i32, i32) {
    %c0_i32 = arith.constant 0 : i32
    %c0_i32_0 = arith.constant 0 : i32
    %c0_i32_1 = arith.constant 0 : i32
    return %c0_i32, %c0_i32_0 : i32, i32
  }
  func.func @transform_2(%arg0: i32) -> (i32, i32) {
    %c0_i32 = arith.constant 0 : i32
    %c0_i32_0 = arith.constant 0 : i32
    %c0_i32_1 = arith.constant 0 : i32
    return %c0_i32, %c0_i32_0 : i32, i32
  }
  func.func @transform_3(%arg0: i32) -> (i32, i32) {
    %c0_i32 = arith.constant 0 : i32
    %c0_i32_0 = arith.constant 0 : i32
    %c0_i32_1 = arith.constant 0 : i32
    return %c0_i32, %c0_i32_0 : i32, i32
  }
  func.func @transform_4(%arg0: i32) -> (i32, i32) {
    %c0_i32 = arith.constant 0 : i32
    %c0_i32_0 = arith.constant 0 : i32
    %c0_i32_1 = arith.constant 0 : i32
    return %c0_i32, %c0_i32_0 : i32, i32
  }
  func.func @transform_5(%arg0: i32) -> (i32, i32) {
    %c0_i32 = arith.constant 0 : i32
    %c0_i32_0 = arith.constant 0 : i32
    return %arg0, %c0_i32 : i32, i32
  }
}

</mosaic_0001>

<llo_original>
// kernel: tpu_custom_call.1
$region0: #{tpu_custom_call.1}
  #allocation0 [shape = 'u32[]', space=smem, size = 0x4, offset = 0x4, fixed_abs, tag = 'smem constant byte address 0x4 - core index']
  #allocation1 [shape = 'u32[144,128]{1,0:T(1,128)}', space=vmem, size = 0x12000, scoped, tag = 'internal scratch']
  %s0 = inlined_call_operand.hbm [shape: f32[8,32], index: 0, kind: input, shape index: {}]
  %s1 = inlined_call_operand.hbm [shape: f32[33,128], index: 1, kind: input, shape index: {}]
  %s2 = inlined_call_operand.hbm [shape: f32[129,128], index: 2, kind: input, shape index: {}]
  %s3 = inlined_call_operand.hbm [shape: f32[129,128], index: 3, kind: input, shape index: {}]
  %s4 = inlined_call_operand.vmem [shape: s32[1,128], index: 4, kind: input, shape index: {}]
  %s5 = inlined_call_operand.hbm [shape: f32[8,128], index: 5, kind: output, shape index: {}]
  %s6 = sld [smem:[#allocation0]]
  $region46: #{tpu_custom_call.1} parent=0
    _
  %s8 = ssub.s32 1, %s6
  %s9 = scalar_select 0, %s8, %s6
  $region1: #{tpu_custom_call.1} parent=0
    #allocation2 [shape = 'u8[4096]{0}', space=vmem, size = 0x1000, scoped, tag = 'input window, operand 0, single buffered']
    #allocation3 [shape = 's32[1]{0}', space=sflag, size = 0x4, scoped, tag = 'scoped memory for tpu_custom_call.1']
    #allocation4 [shape = 's32[1]{0}', space=sflag, size = 0x4, scoped, tag = 'scoped memory for tpu_custom_call.1']
    #allocation5 [shape = 'u8[20480]{0}', space=vmem, size = 0x5000, scoped, tag = 'input window, operand 1, single buffered']
    #allocation6 [shape = 's32[1]{0}', space=sflag, size = 0x4, scoped, tag = 'scoped memory for tpu_custom_call.1']
    #allocation7 [shape = 'u8[69632]{0}', space=vmem, size = 0x11000, scoped, tag = 'input window, operand 2, single buffered']
    #allocation8 [shape = 'u8[69632]{0}', space=vmem, size = 0x11000, scoped, tag = 'input window, operand 3, single buffered']
    #allocation9 [shape = 's32[1]{0}', space=sflag, size = 0x4, scoped, tag = 'scoped memory for tpu_custom_call.1']
    #allocation10 [shape = 'u8[4096]{0}', space=vmem, size = 0x1000, scoped, tag = 'output window, operand 0, single buffered']
    %10 = vsyncpa [#allocation3], 0
    %11 = vsyncpa [#allocation6], 0
    %12 = vsyncpa [#allocation9], 0
    %13 = vsyncpa [#allocation4], 0
    // Predicated region
    $region2: #{tpu_custom_call.1} parent=1 // pred_check
      _
    $region3: #{tpu_custom_call.1} parent=1 // pred_check_branch
      %15 = sbr.rel (0) target = $region5
    $region4: #{tpu_custom_call.1} parent=1 // pred_region
      %s17 = ssub.s32 128, 128
      %18 = vsyncadd [#allocation3], %s17
      %s20 = sshll.u32 [#allocation2], 4
      %s21 = int_to_ptr.vmem [resolvable:$true] %s20
      %23 = dma.hbm_to_vmem [thread:$0]  %s0, 128, %s21, [#allocation3]
    $region5: #{tpu_custom_call.1} parent=1 // pred_fallthru
      _
    // Predicated region
    $region6: #{tpu_custom_call.1} parent=1 // pred_check
      _
    $region7: #{tpu_custom_call.1} parent=1 // pred_check_branch
      %25 = sbr.rel (0) target = $region9
    $region8: #{tpu_custom_call.1} parent=1 // pred_region
      %s27 = ssub.s32 640, 640
      %28 = vsyncadd [#allocation6], %s27
      %s29 = sshll.u32 [#allocation5], 4
      %s30 = int_to_ptr.vmem [resolvable:$true] %s29
      %35 = dma.hbm_to_vmem [thread:$0]  %s1, 640, %s30, [#allocation6], 128, 128, 8
    $region9: #{tpu_custom_call.1} parent=1 // pred_fallthru
      _
    // Predicated region
    $region10: #{tpu_custom_call.1} parent=1 // pred_check
      _
    $region11: #{tpu_custom_call.1} parent=1 // pred_check_branch
      %37 = sbr.rel (0) target = $region13
    $region12: #{tpu_custom_call.1} parent=1 // pred_region
      %s39 = ssub.s32 2176, 2176
      %40 = vsyncadd [#allocation6], %s39
      %s41 = sshll.u32 [#allocation7], 4
      %s42 = int_to_ptr.vmem [resolvable:$true] %s41
      %47 = dma.hbm_to_vmem [thread:$0]  %s2, 2176, %s42, [#allocation6], 128, 128, 8
    $region13: #{tpu_custom_call.1} parent=1 // pred_fallthru
      _
    // Predicated region
    $region14: #{tpu_custom_call.1} parent=1 // pred_check
      _
    $region15: #{tpu_custom_call.1} parent=1 // pred_check_branch
      %49 = sbr.rel (0) target = $region17
    $region16: #{tpu_custom_call.1} parent=1 // pred_region
      %s51 = ssub.s32 2176, 2176
      %52 = vsyncadd [#allocation9], %s51
      %s53 = sshll.u32 [#allocation8], 4
      %s54 = int_to_ptr.vmem [resolvable:$true] %s53
      %59 = dma.hbm_to_vmem [thread:$0]  %s3, 2176, %s54, [#allocation9], 128, 128, 8
    $region17: #{tpu_custom_call.1} parent=1 // pred_fallthru
      _
    // Predicated region
    $region18: #{tpu_custom_call.1} parent=1 // pred_check
      _
    $region19: #{tpu_custom_call.1} parent=1 // pred_check_branch
      %61 = sbr.rel (0) target = $region21
    $region20: #{tpu_custom_call.1} parent=1 // pred_region
      _
    $region21: #{tpu_custom_call.1} parent=1 // pred_fallthru
      _
    // Predicated region
    $region22: #{tpu_custom_call.1} parent=1 // pred_check
      _
    $region23: #{tpu_custom_call.1} parent=1 // pred_check_branch
      %63 = sbr.rel (0) target = $region25
    $region24: #{tpu_custom_call.1} parent=1 // pred_region
      %64 = dma.done [#allocation3], 128
    $region25: #{tpu_custom_call.1} parent=1 // pred_fallthru
      _
    // Predicated region
    $region26: #{tpu_custom_call.1} parent=1 // pred_check
      _
    $region27: #{tpu_custom_call.1} parent=1 // pred_check_branch
      %66 = sbr.rel (0) target = $region29
    $region28: #{tpu_custom_call.1} parent=1 // pred_region
      %67 = dma.done [#allocation6], 640
    $region29: #{tpu_custom_call.1} parent=1 // pred_fallthru
      _
    // Predicated region
    $region30: #{tpu_custom_call.1} parent=1 // pred_check
      _
    $region31: #{tpu_custom_call.1} parent=1 // pred_check_branch
      %69 = sbr.rel (0) target = $region33
    $region32: #{tpu_custom_call.1} parent=1 // pred_region
      %70 = dma.done [#allocation6], 2176
    $region33: #{tpu_custom_call.1} parent=1 // pred_fallthru
      _
    // Predicated region
    $region34: #{tpu_custom_call.1} parent=1 // pred_check
      _
    $region35: #{tpu_custom_call.1} parent=1 // pred_check_branch
      %72 = sbr.rel (0) target = $region37
    $region36: #{tpu_custom_call.1} parent=1 // pred_region
      %73 = dma.done [#allocation9], 2176
    $region37: #{tpu_custom_call.1} parent=1 // pred_fallthru
      _
    %v74 = vld [vmem:[#allocation2] sm:$0xff]
    %v75 = vld [vmem:[#allocation5] sm:$0xff]
    %v76 = vld [vmem:[#allocation5 + $0x8] sm:$0xff]
    %v77 = vld [vmem:[#allocation5 + $0x10] sm:$0xff]
    %v78 = vld [vmem:[#allocation5 + $0x18] sm:$0xff]
    %v79 = vld [vmem:[#allocation5 + $0x20] sm:$0x1]
    %v80 = vlaneseq
    %v81 = vshrl.u32 %v80, 7
    %v82 = vsub.s32 0, %v81
    %v83 = vrot.slane %v79, %v82
    %vm84 = vcmask 261120
    %v86 = vsel %vm84, %v74, 0
    %88 = vmatprep.subr.mxu0 0.0
    %89 = vmatpush1.msra.mxu0 %v75
    %90 = vmatprep.subr.mxu0 0.0
    %91 = vmatpush1.msra.mxu0 %v76
    %92 = vmatprep.subr.mxu0 0.0
    %93 = vmatpush1.msra.mxu0 %v77
    %94 = vmatprep.subr.mxu0 0.0
    %95 = vmatpush1.msra.mxu0 %v78
    %96 = vmatprep.subr.mxu0 0.0
    %97 = vmatpush1.msra.mxu0 0.0
    %98 = vmatprep.subr.mxu0 0.0
    %99 = vmatpush1.msra.mxu0 0.0
    %100 = vmatprep.subr.mxu0 0.0
    %101 = vmatpush1.msra.mxu0 0.0
    %102 = vmatprep.subr.mxu0 0.0
    %103 = vmatpush1.msra.mxu0 0.0
    %104 = vmatprep.subr.mxu0 0.0
    %105 = vmatpush1.msra.mxu0 0.0
    %106 = vmatprep.subr.mxu0 0.0
    %107 = vmatpush1.msra.mxu0 0.0
    %108 = vmatprep.subr.mxu0 0.0
    %109 = vmatpush1.msra.mxu0 0.0
    %110 = vmatprep.subr.mxu0 0.0
    %111 = vmatpush1.msra.mxu0 0.0
    %112 = vmatprep.subr.mxu0 0.0
    %113 = vmatpush1.msra.mxu0 0.0
    %114 = vmatprep.subr.mxu0 0.0
    %115 = vmatpush1.msra.mxu0 0.0
    %116 = vmatprep.subr.mxu0 0.0
    %117 = vmatpush1.msra.mxu0 0.0
    %118 = vmatprep.subr.mxu0 0.0
    %119 = vmatpush1.msra.mxu0 0.0
    %120 = vmatprep.subr.mxu0 0.0
    %121 = vmatpush1.msra.mxu0 0.0
    %122 = vmatprep.subr.mxu0 0.0
    %123 = vmatpush1.msra.mxu0 0.0
    %124 = vmatprep.subr.mxu0 0.0
    %125 = vmatpush1.msra.mxu0 0.0
    %126 = vmatprep.subr.mxu0 0.0
    %127 = vmatpush1.msra.mxu0 0.0
    %128 = vmatprep.subr.mxu0 0.0
    %129 = vmatpush1.msra.mxu0 0.0
    %130 = vmatprep.subr.mxu0 0.0
    %131 = vmatpush1.msra.mxu0 0.0
    %132 = vmatprep.subr.mxu0 0.0
    %133 = vmatpush1.msra.mxu0 0.0
    %134 = vmatprep.subr.mxu0 0.0
    %135 = vmatpush1.msra.mxu0 0.0
    %136 = vmatprep.subr.mxu0 0.0
    %137 = vmatpush1.msra.mxu0 0.0
    %138 = vmatprep.subr.mxu0 0.0
    %139 = vmatpush1.msra.mxu0 0.0
    %140 = vmatprep.subr.mxu0 0.0
    %141 = vmatpush1.msra.mxu0 0.0
    %142 = vmatprep.subr.mxu0 0.0
    %143 = vmatpush1.msra.mxu0 0.0
    %144 = vmatprep.subr.mxu0 0.0
    %145 = vmatpush1.msra.mxu0 0.0
    %146 = vmatprep.subr.mxu0 0.0
    %147 = vmatpush1.msra.mxu0 0.0
    %148 = vmatprep.subr.mxu0 0.0
    %149 = vmatpush1.msra.mxu0 0.0
    %150 = vmatprep.subr.mxu0 0.0
    %151 = vmatpush1.msra.mxu0 0.0
    %152 = vmatprep.mubr.f32.mxu0 0.0
    %153 = vmatmul.mubr.f32.gmra.mrb[0].mxu0 %v86
    %v154 = vpop.f32.mrb[0].mxu0
    %v155 = vadd.f32 %v83, %v154
    %v156 = vpop.f32.mrb[0].mxu0
    %157 = vdwg.mxu0
    %v158 = vxor.u32 %v155, 2147483648
    %v159 = vmul.f32 %v158, 1.442695
    %v160 = vpow.pop %v159
    %v161 = vadd.f32 %v160, 1.0
    %v162 = vrcp.pop %v161
    %v163 = vmul.f32 1.0, %v162
    %v164 = vld [vmem:[#allocation7] sm:$0xff]
    %v165 = vld [vmem:[#allocation7 + $0x8] sm:$0xff]
    %v166 = vld [vmem:[#allocation7 + $0x10] sm:$0xff]
    %v167 = vld [vmem:[#allocation7 + $0x18] sm:$0xff]
    %v168 = vld [vmem:[#allocation7 + $0x20] sm:$0xff]
    %v169 = vld [vmem:[#allocation7 + $0x28] sm:$0xff]
    %v170 = vld [vmem:[#allocation7 + $0x30] sm:$0xff]
    %v171 = vld [vmem:[#allocation7 + $0x38] sm:$0xff]
    %v172 = vld [vmem:[#allocation7 + $0x40] sm:$0xff]
    %v173 = vld [vmem:[#allocation7 + $0x48] sm:$0xff]
    %v174 = vld [vmem:[#allocation7 + $0x50] sm:$0xff]
    %v175 = vld [vmem:[#allocation7 + $0x58] sm:$0xff]
    %v176 = vld [vmem:[#allocation7 + $0x60] sm:$0xff]
    %v177 = vld [vmem:[#allocation7 + $0x68] sm:$0xff]
    %v178 = vld [vmem:[#allocation7 + $0x70] sm:$0xff]
    %v179 = vld [vmem:[#allocation7 + $0x78] sm:$0xff]
    %v180 = vld [vmem:[#allocation7 + $0x80] sm:$0x1]
    %v181 = vlaneseq
    %v182 = vshrl.u32 %v181, 7
    %v183 = vsub.s32 0, %v182
    %v184 = vrot.slane %v180, %v183
    %185 = vmatprep.subr.mxu0 0.0
    %186 = vmatpush1.msra.mxu0 %v164
    %187 = vmatprep.subr.mxu0 0.0
    %188 = vmatpush1.msra.mxu0 %v165
    %189 = vmatprep.subr.mxu0 0.0
    %190 = vmatpush1.msra.mxu0 %v166
    %191 = vmatprep.subr.mxu0 0.0
    %192 = vmatpush1.msra.mxu0 %v167
    %193 = vmatprep.subr.mxu0 0.0
    %194 = vmatpush1.msra.mxu0 %v168
    %195 = vmatprep.subr.mxu0 0.0
    %196 = vmatpush1.msra.mxu0 %v169
    %197 = vmatprep.subr.mxu0 0.0
    %198 = vmatpush1.msra.mxu0 %v170
    %199 = vmatprep.subr.mxu0 0.0
    %200 = vmatpush1.msra.mxu0 %v171
    %201 = vmatprep.subr.mxu0 0.0
    %202 = vmatpush1.msra.mxu0 %v172
    %203 = vmatprep.subr.mxu0 0.0
    %204 = vmatpush1.msra.mxu0 %v173
    %205 = vmatprep.subr.mxu0 0.0
    %206 = vmatpush1.msra.mxu0 %v174
    %207 = vmatprep.subr.mxu0 0.0
    %208 = vmatpush1.msra.mxu0 %v175
    %209 = vmatprep.subr.mxu0 0.0
    %210 = vmatpush1.msra.mxu0 %v176
    %211 = vmatprep.subr.mxu0 0.0
    %212 = vmatpush1.msra.mxu0 %v177
    %213 = vmatprep.subr.mxu0 0.0
    %214 = vmatpush1.msra.mxu0 %v178
    %215 = vmatprep.subr.mxu0 0.0
    %216 = vmatpush1.msra.mxu0 %v179
    %217 = vmatprep.subr.mxu0 0.0
    %218 = vmatpush1.msra.mxu0 0.0
    %219 = vmatprep.subr.mxu0 0.0
    %220 = vmatpush1.msra.mxu0 0.0
    %221 = vmatprep.subr.mxu0 0.0
    %222 = vmatpush1.msra.mxu0 0.0
    %223 = vmatprep.subr.mxu0 0.0
    %224 = vmatpush1.msra.mxu0 0.0
    %225 = vmatprep.subr.mxu0 0.0
    %226 = vmatpush1.msra.mxu0 0.0
    %227 = vmatprep.subr.mxu0 0.0
    %228 = vmatpush1.msra.mxu0 0.0
    %229 = vmatprep.subr.mxu0 0.0
    %230 = vmatpush1.msra.mxu0 0.0
    %231 = vmatprep.subr.mxu0 0.0
    %232 = vmatpush1.msra.mxu0 0.0
    %233 = vmatprep.subr.mxu0 0.0
    %234 = vmatpush1.msra.mxu0 0.0
    %235 = vmatprep.subr.mxu0 0.0
    %236 = vmatpush1.msra.mxu0 0.0
    %237 = vmatprep.subr.mxu0 0.0
    %238 = vmatpush1.msra.mxu0 0.0
    %239 = vmatprep.subr.mxu0 0.0
    %240 = vmatpush1.msra.mxu0 0.0
    %241 = vmatprep.subr.mxu0 0.0
    %242 = vmatpush1.msra.mxu0 0.0
    %243 = vmatprep.subr.mxu0 0.0
    %244 = vmatpush1.msra.mxu0 0.0
    %245 = vmatprep.subr.mxu0 0.0
    %246 = vmatpush1.msra.mxu0 0.0
    %247 = vmatprep.subr.mxu0 0.0
    %248 = vmatpush1.msra.mxu0 0.0
    %249 = vmatprep.mubr.f32.mxu0 0.0
    %250 = vmatmul.mubr.f32.gmra.mrb[0].mxu0 %v163
    %v251 = vpop.f32.mrb[0].mxu0
    %v252 = vadd.f32 %v184, %v251
    %v253 = vpop.f32.mrb[0].mxu0
    %254 = vdwg.mxu0
    %v255 = vxor.u32 %v252, 2147483648
    %v256 = vmul.f32 %v255, 1.442695
    %v257 = vpow.pop %v256
    %v258 = vadd.f32 %v257, 1.0
    %v259 = vrcp.pop %v258
    %v260 = vmul.f32 1.0, %v259
    %v261 = vld [vmem:[#allocation8] sm:$0xff]
    %v262 = vld [vmem:[#allocation8 + $0x8] sm:$0xff]
    %v263 = vld [vmem:[#allocation8 + $0x10] sm:$0xff]
    %v264 = vld [vmem:[#allocation8 + $0x18] sm:$0xff]
    %v265 = vld [vmem:[#allocation8 + $0x20] sm:$0xff]
    %v266 = vld [vmem:[#allocation8 + $0x28] sm:$0xff]
    %v267 = vld [vmem:[#allocation8 + $0x30] sm:$0xff]
    %v268 = vld [vmem:[#allocation8 + $0x38] sm:$0xff]
    %v269 = vld [vmem:[#allocation8 + $0x40] sm:$0xff]
    %v270 = vld [vmem:[#allocation8 + $0x48] sm:$0xff]
    %v271 = vld [vmem:[#allocation8 + $0x50] sm:$0xff]
    %v272 = vld [vmem:[#allocation8 + $0x58] sm:$0xff]
    %v273 = vld [vmem:[#allocation8 + $0x60] sm:$0xff]
    %v274 = vld [vmem:[#allocation8 + $0x68] sm:$0xff]
    %v275 = vld [vmem:[#allocation8 + $0x70] sm:$0xff]
    %v276 = vld [vmem:[#allocation8 + $0x78] sm:$0xff]
    %v277 = vld [vmem:[#allocation8 + $0x80] sm:$0x1]
    %v278 = vlaneseq
    %v279 = vshrl.u32 %v278, 7
    %v280 = vsub.s32 0, %v279
    %v281 = vrot.slane %v277, %v280
    %282 = vmatprep.subr.mxu0 0.0
    %283 = vmatpush1.msra.mxu0 %v261
    %284 = vmatprep.subr.mxu0 0.0
    %285 = vmatpush1.msra.mxu0 %v262
    %286 = vmatprep.subr.mxu0 0.0
    %287 = vmatpush1.msra.mxu0 %v263
    %288 = vmatprep.subr.mxu0 0.0
    %289 = vmatpush1.msra.mxu0 %v264
    %290 = vmatprep.subr.mxu0 0.0
    %291 = vmatpush1.msra.mxu0 %v265
    %292 = vmatprep.subr.mxu0 0.0
    %293 = vmatpush1.msra.mxu0 %v266
    %294 = vmatprep.subr.mxu0 0.0
    %295 = vmatpush1.msra.mxu0 %v267
    %296 = vmatprep.subr.mxu0 0.0
    %297 = vmatpush1.msra.mxu0 %v268
    %298 = vmatprep.subr.mxu0 0.0
    %299 = vmatpush1.msra.mxu0 %v269
    %300 = vmatprep.subr.mxu0 0.0
    %301 = vmatpush1.msra.mxu0 %v270
    %302 = vmatprep.subr.mxu0 0.0
    %303 = vmatpush1.msra.mxu0 %v271
    %304 = vmatprep.subr.mxu0 0.0
    %305 = vmatpush1.msra.mxu0 %v272
    %306 = vmatprep.subr.mxu0 0.0
    %307 = vmatpush1.msra.mxu0 %v273
    %308 = vmatprep.subr.mxu0 0.0
    %309 = vmatpush1.msra.mxu0 %v274
    %310 = vmatprep.subr.mxu0 0.0
    %311 = vmatpush1.msra.mxu0 %v275
    %312 = vmatprep.subr.mxu0 0.0
    %313 = vmatpush1.msra.mxu0 %v276
    %314 = vmatprep.subr.mxu0 0.0
    %315 = vmatpush1.msra.mxu0 0.0
    %316 = vmatprep.subr.mxu0 0.0
    %317 = vmatpush1.msra.mxu0 0.0
    %318 = vmatprep.subr.mxu0 0.0
    %319 = vmatpush1.msra.mxu0 0.0
    %320 = vmatprep.subr.mxu0 0.0
    %321 = vmatpush1.msra.mxu0 0.0
    %322 = vmatprep.subr.mxu0 0.0
    %323 = vmatpush1.msra.mxu0 0.0
    %324 = vmatprep.subr.mxu0 0.0
    %325 = vmatpush1.msra.mxu0 0.0
    %326 = vmatprep.subr.mxu0 0.0
    %327 = vmatpush1.msra.mxu0 0.0
    %328 = vmatprep.subr.mxu0 0.0
    %329 = vmatpush1.msra.mxu0 0.0
    %330 = vmatprep.subr.mxu0 0.0
    %331 = vmatpush1.msra.mxu0 0.0
    %332 = vmatprep.subr.mxu0 0.0
    %333 = vmatpush1.msra.mxu0 0.0
    %334 = vmatprep.subr.mxu0 0.0
    %335 = vmatpush1.msra.mxu0 0.0
    %336 = vmatprep.subr.mxu0 0.0
    %337 = vmatpush1.msra.mxu0 0.0
    %338 = vmatprep.subr.mxu0 0.0
    %339 = vmatpush1.msra.mxu0 0.0
    %340 = vmatprep.subr.mxu0 0.0
    %341 = vmatpush1.msra.mxu0 0.0
    %342 = vmatprep.subr.mxu0 0.0
    %343 = vmatpush1.msra.mxu0 0.0
    %344 = vmatprep.subr.mxu0 0.0
    %345 = vmatpush1.msra.mxu0 0.0
    %346 = vmatprep.mubr.f32.mxu0 0.0
    %347 = vmatmul.mubr.f32.gmra.mrb[0].mxu0 %v260
    %v348 = vpop.f32.mrb[0].mxu0
    %v349 = vadd.f32 %v281, %v348
    %v350 = vpop.f32.mrb[0].mxu0
    %351 = vdwg.mxu0
    %v352 = vld [vmem:[%s4] sm:$0x1]
    %vm353 = vcmp.ne.s32.totalorder %v352, 0
    %v354 = vsel %vm353, 1, 0
    %v355 = vlaneseq
    %v356 = vshrl.u32 %v355, 7
    %v357 = vsub.s32 0, %v356
    %v358 = vrot.slane %v354, %v357
    %vm359 = vcmp.eq.s32.totalorder %v358, 1
    %v360 = vsel %vm359, %v349, 0.0
    %v361 = vmul.f32 %v360, 1.442695
    %v362 = vpow.pop %v361
    %v363 = vsel %vm359, %v362, %v349
    %364 = vst [vmem:[#allocation10] sm:$0xff] %v363
    // Predicated region
    $region38: #{tpu_custom_call.1} parent=1 // pred_check
      _
    $region39: #{tpu_custom_call.1} parent=1 // pred_check_branch
      %366 = sbr.rel (0) target = $region41
    $region40: #{tpu_custom_call.1} parent=1 // pred_region
      %s368 = ssub.s32 128, 128
      %369 = vsyncadd [#allocation4], %s368
      %s371 = sshll.u32 [#allocation10], 4
      %s372 = int_to_ptr.vmem [resolvable:$true] %s371
      %374 = dma.vmem_to_hbm [thread:$0]  %s372, 128, %s5, [#allocation4]
    $region41: #{tpu_custom_call.1} parent=1 // pred_fallthru
      _
    // Predicated region
    $region42: #{tpu_custom_call.1} parent=1 // pred_check
      _
    $region43: #{tpu_custom_call.1} parent=1 // pred_check_branch
      %376 = sbr.rel (0) target = $region45
    $region44: #{tpu_custom_call.1} parent=1 // pred_region
      %377 = dma.done [#allocation4], 128
    $region45: #{tpu_custom_call.1} parent=1 // pred_fallthru
      _
    %378 = vsyncpa [#allocation3], 1
    %379 = vsyncpa [#allocation6], 1
    %380 = vsyncpa [#allocation9], 1
    %381 = vsyncpa [#allocation4], 1

</llo_original>
